<compile_context>
chip_gen: v6e
topology: v6e:2x2x1
jax: 0.10.0
libtpu: 0.0.40
codegen_flags: <defaults>
</compile_context>

<pallas_src>
import functools
import math

import jax
import jax.numpy as jnp
from jax.experimental import pallas as pl
from jax.experimental.pallas import tpu as pltpu

BN_EPS = 1e-5
LANE = 128          # lane width: last-dim padding target
SUBLANE = 8         # f32 sublane multiple: batch padding target
MAX_BATCH_TILE = 512  # rows per grid step (keeps activations well inside VMEM)


def _round_up(x, m):
    return (x + m - 1) // m * m


# ----------------------------------------------------------------------------
# Pallas kernel: full encoder+decoder forward for one batch tile, fused.
# ----------------------------------------------------------------------------
def _fused_autoencoder_kernel(x_ref, w_ref, b_ref, enc_ref, dec_ref,
                              *, n_encoder_layers, relu_flags):
    """x_ref: (TM, D_pad); w_ref: (L, D_pad, D_pad); b_ref: (L, 1, D_pad)."""
    h = x_ref[...]                                   # (TM, D_pad) f32
    for l in range(len(relu_flags)):                 # static unrolled layer loop
        w = w_ref[l]                                 # (D_pad, D_pad)
        b = b_ref[l]                                 # (1, D_pad)
        h = jnp.dot(h, w, preferred_element_type=jnp.float32) + b   # MXU + VPU
        if relu_flags[l]:
            h = jnp.maximum(h, 0.0)
        if l == n_encoder_layers - 1:
            enc_ref[...] = h.astype(enc_ref.dtype)   # latent (bottleneck) output
    dec_ref[...] = h.astype(dec_ref.dtype)           # reconstruction output


def autoencoder_forward(x_flat, w_stack, b_stack, *, relu_flags,
                        n_encoder_layers, input_dim, latent_dim):
    """x_flat: (B, input_dim) f32 -> (encoded (B, latent), decoded (B, input_dim))."""
    B, d_in = x_flat.shape
    L, d_pad, _ = w_stack.shape

    # Batch tiling: one tile if small, grid over batch tiles if large.
    tm = min(MAX_BATCH_TILE, max(_round_up(B, SUBLANE), SUBLANE))
    B_pad = _round_up(max(B, SUBLANE), tm)
    n_tiles = B_pad // tm

    # Zero-pad activations to (B_pad, d_pad): padded lanes stay zero through
    # every layer (weight cols / bias lanes are zero-padded), padded batch rows
    # are sliced off at the end.
    x_pad = jnp.zeros((B_pad, d_pad), jnp.float32).at[:B, :d_in].set(x_flat)

    kernel = functools.partial(_fused_autoencoder_kernel,
                               n_encoder_layers=n_encoder_layers,
                               relu_flags=relu_flags)
    enc_pad, dec_pad = pl.pallas_call(
        kernel,
        out_shape=(jax.ShapeDtypeStruct((B_pad, d_pad), jnp.float32),
                   jax.ShapeDtypeStruct((B_pad, d_pad), jnp.float32)),
        grid=(n_tiles,),
        in_specs=[
            pl.BlockSpec((tm, d_pad), lambda i: (i, 0)),          # activations
            pl.BlockSpec((L, d_pad, d_pad), lambda i: (0, 0, 0)),  # weights (resident)
            pl.BlockSpec((L, 1, d_pad), lambda i: (0, 0, 0)),      # biases (resident)
        ],
        out_specs=(
            pl.BlockSpec((tm, d_pad), lambda i: (i, 0)),           # encoded
            pl.BlockSpec((tm, d_pad), lambda i: (i, 0)),           # decoded
        ),
        compiler_params=pltpu.CompilerParams(
            dimension_semantics=("parallel",)),
    )(x_pad, w_stack, b_stack)

    return enc_pad[:B, :latent_dim], dec_pad[:B, :input_dim]


# ----------------------------------------------------------------------------
# Parameter construction (mirrors nn.Linear / eval-mode nn.BatchNorm1d)
# ----------------------------------------------------------------------------
def _init_linear(key, in_dim, out_dim):
    # torch.nn.Linear default: U(-1/sqrt(in), 1/sqrt(in)) for weight & bias.
    kw, kb = jax.random.split(key)
    bound = 1.0 / math.sqrt(in_dim)
    w = jax.random.uniform(kw, (in_dim, out_dim), jnp.float32, -bound, bound)
    b = jax.random.uniform(kb, (out_dim,), jnp.float32, -bound, bound)
    return w, b


def _bn_affine(dim):
    # torch defaults: gamma=1, beta=0, running_mean=0, running_var=1 (eval mode).
    gamma = jnp.ones((dim,), jnp.float32)
    beta = jnp.zeros((dim,), jnp.float32)
    running_mean = jnp.zeros((dim,), jnp.float32)
    running_var = jnp.ones((dim,), jnp.float32)
    scale = gamma / jnp.sqrt(running_var + BN_EPS)
    shift = beta - running_mean * scale
    return scale, shift


def build_autoencoder_params(key, input_dim, layer_dims):
    """Builds all encoder+decoder layers with eval-mode BN folded into Linear.

    Returns (layers, n_encoder_layers); each layer is dict(w, b, relu).
    """
    # (in_dim, out_dim, has_bn_relu) in module order.
    layer_specs = []
    cur = input_dim
    for dim in layer_dims[:-1]:                      # encoder hidden layers
        layer_specs.append((cur, dim, True))
        cur = dim
    layer_specs.append((cur, layer_dims[-1], False))  # latent Linear (no BN/ReLU)
    n_encoder_layers = len(layer_specs)
    cur = layer_dims[-1]
    for dim in reversed(layer_dims[:-1]):            # decoder hidden layers
        layer_specs.append((cur, dim, True))
        cur = dim
    layer_specs.append((cur, input_dim, False))      # output Linear (no BN/ReLU)

    keys = jax.random.split(key, len(layer_specs))
    layers = []
    for k, (din, dout, has_bn_relu) in zip(keys, layer_specs):
        w, b = _init_linear(k, din, dout)
        if has_bn_relu:
            scale, shift = _bn_affine(dout)
            # Fold BN affine: (x@W + b)*scale + shift == x@(W*scale) + (b*scale+shift)
            w = w * scale[None, :]
            b = b * scale + shift
        layers.append(dict(w=w, b=b, relu=has_bn_relu))
    return layers, n_encoder_layers


def pack_layers(layers, d_pad):
    """Zero-pad every layer to (d_pad, d_pad) and stack -> kernel inputs."""
    L = len(layers)
    w_stack = jnp.zeros((L, d_pad, d_pad), jnp.float32)
    b_stack = jnp.zeros((L, 1, d_pad), jnp.float32)
    for i, layer in enumerate(layers):
        din, dout = layer["w"].shape
        w_stack = w_stack.at[i, :din, :dout].set(layer["w"])
        b_stack = b_stack.at[i, 0, :dout].set(layer["b"])
    relu_flags = tuple(bool(layer["relu"]) for layer in layers)
    return w_stack, b_stack, relu_flags


# ----------------------------------------------------------------------------
# Pure-JAX reference (same folded parameters) for correctness check
# ----------------------------------------------------------------------------
def _ref_forward(x_flat, layers, n_encoder_layers):
    h = x_flat
    enc = None
    for i, layer in enumerate(layers):
        h = h @ layer["w"] + layer["b"]
        if layer["relu"]:
            h = jnp.maximum(h, 0.0)
        if i == n_encoder_layers - 1:
            enc = h
    return enc, h


if __name__ == "__main__":
    # Small, module-consistent configuration.
    window_lengths = [16, 8]
    num_channels = [4, 2]
    layer_dims = [64, 32, 16]                      # params['layer_dims']
    batch = 8
    input_dim = sum(w * c for w, c in zip(window_lengths, num_channels))  # 80
    latent_dim = layer_dims[-1]

    root = jax.random.PRNGKey(0)
    k_param, k_x0, k_x1 = jax.random.split(root, 3)

    # Per-sensor raw inputs (B, C, W), like the data-loader tensors.
    x_sensors = [
        jax.random.normal(k_x0, (batch, num_channels[0], window_lengths[0]),
                          jnp.float32),
        jax.random.normal(k_x1, (batch, num_channels[1], window_lengths[1]),
                          jnp.float32),
    ]
    # torch: concat([x.flatten(1) for x in x_batch], axis=1); then view(-1, input_dim)
    x_flat = jnp.concatenate([x.reshape(batch, -1) for x in x_sensors], axis=1)
    assert x_flat.shape == (batch, input_dim)

    layers, n_enc = build_autoencoder_params(k_param, input_dim, layer_dims)

    all_dims = [input_dim] + list(layer_dims) + list(reversed(layer_dims[:-1])) \
        + [input_dim]
    d_pad = max(_round_up(d, LANE) for d in all_dims)          # 128 here
    w_stack, b_stack, relu_flags = pack_layers(layers, d_pad)

    fwd = jax.jit(functools.partial(
        autoencoder_forward,
        relu_flags=relu_flags, n_encoder_layers=n_enc,
        input_dim=input_dim, latent_dim=latent_dim))

    encoded, decoded = fwd(x_flat, w_stack, b_stack)
    encoded = jax.block_until_ready(encoded)
    decoded = jax.block_until_ready(decoded)

    # Correctness vs. pure-JAX reference (same BN-folded params).
    enc_ref, dec_ref = _ref_forward(x_flat, layers, n_enc)
    assert encoded.shape == (batch, latent_dim)
    assert decoded.shape == (batch, input_dim)
    assert jnp.allclose(encoded, enc_ref, atol=1e-4, rtol=1e-4)
    assert jnp.allclose(decoded, dec_ref, atol=1e-4, rtol=1e-4)

    print("KERNEL_OK")
</pallas_src>

<mosaic_0001>
module attributes {stable_mosaic.version = 11 : i64} {
  func.func @_fused_autoencoder_kernel(%arg0: i32, %arg1: memref<8x128xf32, #tpu.memory_space<vmem>>, %arg2: memref<6x128x128xf32, #tpu.memory_space<vmem>>, %arg3: memref<6x1x128xf32, #tpu.memory_space<vmem>>, %arg4: memref<8x128xf32, #tpu.memory_space<vmem>>, %arg5: memref<8x128xf32, #tpu.memory_space<vmem>>) attributes {dimension_semantics = [#tpu.dimension_semantics<parallel>], iteration_bounds = array<i64: 1>, scalar_prefetch = 0 : i64, scratch_operands = 0 : i64, tpu.core_type = #tpu.core_type<tc>, window_params = [{transform_indices = @transform_0, window_bounds = array<i64: 8, 128>}, {pipeline_mode = #tpu.pipeline_mode<synchronous>, transform_indices = @transform_1, window_bounds = array<i64: 6, 128, 128>}, {pipeline_mode = #tpu.pipeline_mode<synchronous>, transform_indices = @transform_2, window_bounds = array<i64: 6, 1, 128>}, {transform_indices = @transform_3, window_bounds = array<i64: 8, 128>}, {transform_indices = @transform_4, window_bounds = array<i64: 8, 128>}]} {
    %c0 = arith.constant 0 : index
    %c0_0 = arith.constant 0 : index
    %0 = vector.load %arg1[%c0, %c0_0] : memref<8x128xf32, #tpu.memory_space<vmem>>, vector<8x128xf32>
    %c0_1 = arith.constant 0 : index
    %c0_2 = arith.constant 0 : index
    %c0_3 = arith.constant 0 : index
    %1 = vector.load %arg2[%c0_1, %c0_2, %c0_3] : memref<6x128x128xf32, #tpu.memory_space<vmem>>, vector<1x128x128xf32>
    %2 = vector.shape_cast %1 : vector<1x128x128xf32> to vector<128x128xf32>
    %c0_4 = arith.constant 0 : index
    %c0_5 = arith.constant 0 : index
    %c0_6 = arith.constant 0 : index
    %3 = vector.load %arg3[%c0_4, %c0_5, %c0_6] : memref<6x1x128xf32, #tpu.memory_space<vmem>>, vector<1x1x128xf32>
    %4 = vector.shape_cast %3 : vector<1x1x128xf32> to vector<1x128xf32>
    %cst = arith.constant dense<0.000000e+00> : vector<8x128xf32>
    %5 = tpu.matmul %0, %2, %cst {dimension_numbers = #tpu.dot_dimension_numbers<[1], [0], [0], [1], [0, 0, 1, 1], [], []>} : vector<8x128xf32>, vector<128x128xf32>, vector<8x128xf32> -> vector<8x128xf32>
    %6 = vector.broadcast %4 : vector<1x128xf32> to vector<8x128xf32>
    %7 = arith.addf %5, %6 : vector<8x128xf32>
    %cst_7 = arith.constant 0.000000e+00 : f32
    %8 = vector.broadcast %cst_7 : f32 to vector<8x128xf32>
    %9 = arith.maximumf %7, %8 : vector<8x128xf32>
    %c1 = arith.constant 1 : index
    %c0_8 = arith.constant 0 : index
    %c0_9 = arith.constant 0 : index
    %10 = vector.load %arg2[%c1, %c0_8, %c0_9] : memref<6x128x128xf32, #tpu.memory_space<vmem>>, vector<1x128x128xf32>
    %11 = vector.shape_cast %10 : vector<1x128x128xf32> to vector<128x128xf32>
    %c1_10 = arith.constant 1 : index
    %c0_11 = arith.constant 0 : index
    %c0_12 = arith.constant 0 : index
    %12 = vector.load %arg3[%c1_10, %c0_11, %c0_12] : memref<6x1x128xf32, #tpu.memory_space<vmem>>, vector<1x1x128xf32>
    %13 = vector.shape_cast %12 : vector<1x1x128xf32> to vector<1x128xf32>
    %cst_13 = arith.constant dense<0.000000e+00> : vector<8x128xf32>
    %14 = tpu.matmul %9, %11, %cst_13 {dimension_numbers = #tpu.dot_dimension_numbers<[1], [0], [0], [1], [0, 0, 1, 1], [], []>} : vector<8x128xf32>, vector<128x128xf32>, vector<8x128xf32> -> vector<8x128xf32>
    %15 = vector.broadcast %13 : vector<1x128xf32> to vector<8x128xf32>
    %16 = arith.addf %14, %15 : vector<8x128xf32>
    %cst_14 = arith.constant 0.000000e+00 : f32
    %17 = vector.broadcast %cst_14 : f32 to vector<8x128xf32>
    %18 = arith.maximumf %16, %17 : vector<8x128xf32>
    %c2 = arith.constant 2 : index
    %c0_15 = arith.constant 0 : index
    %c0_16 = arith.constant 0 : index
    %19 = vector.load %arg2[%c2, %c0_15, %c0_16] : memref<6x128x128xf32, #tpu.memory_space<vmem>>, vector<1x128x128xf32>
    %20 = vector.shape_cast %19 : vector<1x128x128xf32> to vector<128x128xf32>
    %c2_17 = arith.constant 2 : index
    %c0_18 = arith.constant 0 : index
    %c0_19 = arith.constant 0 : index
    %21 = vector.load %arg3[%c2_17, %c0_18, %c0_19] : memref<6x1x128xf32, #tpu.memory_space<vmem>>, vector<1x1x128xf32>
    %22 = vector.shape_cast %21 : vector<1x1x128xf32> to vector<1x128xf32>
    %cst_20 = arith.constant dense<0.000000e+00> : vector<8x128xf32>
    %23 = tpu.matmul %18, %20, %cst_20 {dimension_numbers = #tpu.dot_dimension_numbers<[1], [0], [0], [1], [0, 0, 1, 1], [], []>} : vector<8x128xf32>, vector<128x128xf32>, vector<8x128xf32> -> vector<8x128xf32>
    %24 = vector.broadcast %22 : vector<1x128xf32> to vector<8x128xf32>
    %25 = arith.addf %23, %24 : vector<8x128xf32>
    %c0_21 = arith.constant 0 : index
    %c0_22 = arith.constant 0 : index
    %26 = vector.load %arg4[%c0_21, %c0_22] : memref<8x128xf32, #tpu.memory_space<vmem>>, vector<8x128xf32>
    tpu.vector_store %arg4[%c0_21, %c0_22], %25 {strides = array<i32>} : memref<8x128xf32, #tpu.memory_space<vmem>>, vector<8x128xf32>,
    %c3 = arith.constant 3 : index
    %c0_23 = arith.constant 0 : index
    %c0_24 = arith.constant 0 : index
    %27 = vector.load %arg2[%c3, %c0_23, %c0_24] : memref<6x128x128xf32, #tpu.memory_space<vmem>>, vector<1x128x128xf32>
    %28 = vector.shape_cast %27 : vector<1x128x128xf32> to vector<128x128xf32>
    %c3_25 = arith.constant 3 : index
    %c0_26 = arith.constant 0 : index
    %c0_27 = arith.constant 0 : index
    %29 = vector.load %arg3[%c3_25, %c0_26, %c0_27] : memref<6x1x128xf32, #tpu.memory_space<vmem>>, vector<1x1x128xf32>
    %30 = vector.shape_cast %29 : vector<1x1x128xf32> to vector<1x128xf32>
    %cst_28 = arith.constant dense<0.000000e+00> : vector<8x128xf32>
    %31 = tpu.matmul %25, %28, %cst_28 {dimension_numbers = #tpu.dot_dimension_numbers<[1], [0], [0], [1], [0, 0, 1, 1], [], []>} : vector<8x128xf32>, vector<128x128xf32>, vector<8x128xf32> -> vector<8x128xf32>
    %32 = vector.broadcast %30 : vector<1x128xf32> to vector<8x128xf32>
    %33 = arith.addf %31, %32 : vector<8x128xf32>
    %cst_29 = arith.constant 0.000000e+00 : f32
    %34 = vector.broadcast %cst_29 : f32 to vector<8x128xf32>
    %35 = arith.maximumf %33, %34 : vector<8x128xf32>
    %c4 = arith.constant 4 : index
    %c0_30 = arith.constant 0 : index
    %c0_31 = arith.constant 0 : index
    %36 = vector.load %arg2[%c4, %c0_30, %c0_31] : memref<6x128x128xf32, #tpu.memory_space<vmem>>, vector<1x128x128xf32>
    %37 = vector.shape_cast %36 : vector<1x128x128xf32> to vector<128x128xf32>
    %c4_32 = arith.constant 4 : index
    %c0_33 = arith.constant 0 : index
    %c0_34 = arith.constant 0 : index
    %38 = vector.load %arg3[%c4_32, %c0_33, %c0_34] : memref<6x1x128xf32, #tpu.memory_space<vmem>>, vector<1x1x128xf32>
    %39 = vector.shape_cast %38 : vector<1x1x128xf32> to vector<1x128xf32>
    %cst_35 = arith.constant dense<0.000000e+00> : vector<8x128xf32>
    %40 = tpu.matmul %35, %37, %cst_35 {dimension_numbers = #tpu.dot_dimension_numbers<[1], [0], [0], [1], [0, 0, 1, 1], [], []>} : vector<8x128xf32>, vector<128x128xf32>, vector<8x128xf32> -> vector<8x128xf32>
    %41 = vector.broadcast %39 : vector<1x128xf32> to vector<8x128xf32>
    %42 = arith.addf %40, %41 : vector<8x128xf32>
    %cst_36 = arith.constant 0.000000e+00 : f32
    %43 = vector.broadcast %cst_36 : f32 to vector<8x128xf32>
    %44 = arith.maximumf %42, %43 : vector<8x128xf32>
    %c5 = arith.constant 5 : index
    %c0_37 = arith.constant 0 : index
    %c0_38 = arith.constant 0 : index
    %45 = vector.load %arg2[%c5, %c0_37, %c0_38] : memref<6x128x128xf32, #tpu.memory_space<vmem>>, vector<1x128x128xf32>
    %46 = vector.shape_cast %45 : vector<1x128x128xf32> to vector<128x128xf32>
    %c5_39 = arith.constant 5 : index
    %c0_40 = arith.constant 0 : index
    %c0_41 = arith.constant 0 : index
    %47 = vector.load %arg3[%c5_39, %c0_40, %c0_41] : memref<6x1x128xf32, #tpu.memory_space<vmem>>, vector<1x1x128xf32>
    %48 = vector.shape_cast %47 : vector<1x1x128xf32> to vector<1x128xf32>
    %cst_42 = arith.constant dense<0.000000e+00> : vector<8x128xf32>
    %49 = tpu.matmul %44, %46, %cst_42 {dimension_numbers = #tpu.dot_dimension_numbers<[1], [0], [0], [1], [0, 0, 1, 1], [], []>} : vector<8x128xf32>, vector<128x128xf32>, vector<8x128xf32> -> vector<8x128xf32>
    %50 = vector.broadcast %48 : vector<1x128xf32> to vector<8x128xf32>
    %51 = arith.addf %49, %50 : vector<8x128xf32>
    %c0_43 = arith.constant 0 : index
    %c0_44 = arith.constant 0 : index
    %52 = vector.load %arg5[%c0_43, %c0_44] : memref<8x128xf32, #tpu.memory_space<vmem>>, vector<8x128xf32>
    tpu.vector_store %arg5[%c0_43, %c0_44], %51 {strides = array<i32>} : memref<8x128xf32, #tpu.memory_space<vmem>>, vector<8x128xf32>,
    return
  }
  func.func @transform_0(%arg0: i32) -> (i32, i32) {
    %c0_i32 = arith.constant 0 : i32
    %c0_i32_0 = arith.constant 0 : i32
    return %arg0, %c0_i32 : i32, i32
  }
  func.func @transform_1(%arg0: i32) -> (i32, i32, i32) {
    %c0_i32 = arith.constant 0 : i32
    %c0_i32_0 = arith.constant 0 : i32
    %c0_i32_1 = arith.constant 0 : i32
    %c0_i32_2 = arith.constant 0 : i32
    return %c0_i32, %c0_i32_0, %c0_i32_1 : i32, i32, i32
  }
  func.func @transform_2(%arg0: i32) -> (i32, i32, i32) {
    %c0_i32 = arith.constant 0 : i32
    %c0_i32_0 = arith.constant 0 : i32
    %c0_i32_1 = arith.constant 0 : i32
    %c0_i32_2 = arith.constant 0 : i32
    return %c0_i32, %c0_i32_0, %c0_i32_1 : i32, i32, i32
  }
  func.func @transform_3(%arg0: i32) -> (i32, i32) {
    %c0_i32 = arith.constant 0 : i32
    %c0_i32_0 = arith.constant 0 : i32
    return %arg0, %c0_i32 : i32, i32
  }
  func.func @transform_4(%arg0: i32) -> (i32, i32) {
    %c0_i32 = arith.constant 0 : i32
    %c0_i32_0 = arith.constant 0 : i32
    return %arg0, %c0_i32 : i32, i32
  }
}

</mosaic_0001>

<llo_original>
// kernel: autoencoder_forward.1
$region0: #{autoencoder_forward.1}
  #allocation0 [shape = 'u32[]', space=smem, size = 0x4, offset = 0x4, fixed_abs, tag = 'smem constant byte address 0x4 - core index']
  #allocation1 [shape = 'u32[144,128]{1,0:T(1,128)}', space=vmem, size = 0x12000, scoped, tag = 'internal scratch']
  %s0 = inlined_call_operand.vmem [shape: f32[8,128], index: 0, kind: input, shape index: {}]
  %s1 = inlined_call_operand.hbm [shape: f32[6,128,128], index: 1, kind: input, shape index: {}]
  %s2 = inlined_call_operand.vmem [shape: f32[6,1,128], index: 2, kind: input, shape index: {}]
  %s3 = inlined_call_operand.hbm [shape: f32[8,128], index: 3, kind: output, shape index: {0}]
  %s4 = inlined_call_operand.hbm [shape: f32[8,128], index: 4, kind: output, shape index: {1}]
  %5 = xla_tuple %s3, %s4
  %s6 = sld [smem:[#allocation0]]
  $region34: #{autoencoder_forward.1} parent=0
    _
  %s8 = ssub.s32 1, %s6
  %s9 = scalar_select 0, %s8, %s6
  $region1: #{autoencoder_forward.1} parent=0
    #allocation2 [shape = 'u8[393216]{0}', space=vmem, size = 0x60000, scoped, tag = 'input window, operand 1, single buffered']
    #allocation3 [shape = 's32[1]{0}', space=sflag, size = 0x4, scoped, tag = 'scoped memory for autoencoder_forward.1']
    #allocation4 [shape = 's32[1]{0}', space=sflag, size = 0x4, scoped, tag = 'scoped memory for autoencoder_forward.1']
    #allocation5 [shape = 'u8[4096]{0}', space=vmem, size = 0x1000, scoped, tag = 'output window, operand 0, single buffered']
    #allocation6 [shape = 'u8[4096]{0}', space=vmem, size = 0x1000, scoped, tag = 'output window, operand 1, single buffered']
    #allocation7 [shape = 's32[1]{0}', space=sflag, size = 0x4, scoped, tag = 'scoped memory for autoencoder_forward.1']
    %10 = vsyncpa [#allocation3], 0
    %11 = vsyncpa [#allocation4], 0
    %12 = vsyncpa [#allocation7], 0
    // Predicated region
    $region2: #{autoencoder_forward.1} parent=1 // pred_check
      _
    $region3: #{autoencoder_forward.1} parent=1 // pred_check_branch
      %14 = sbr.rel (0) target = $region5
    $region4: #{autoencoder_forward.1} parent=1 // pred_region
      _
    $region5: #{autoencoder_forward.1} parent=1 // pred_fallthru
      _
    // Predicated region
    $region6: #{autoencoder_forward.1} parent=1 // pred_check
      _
    $region7: #{autoencoder_forward.1} parent=1 // pred_check_branch
      %16 = sbr.rel (0) target = $region9
    $region8: #{autoencoder_forward.1} parent=1 // pred_region
      %s18 = ssub.s32 12288, 12288
      %19 = vsyncadd [#allocation3], %s18
      %s20 = sshll.u32 [#allocation2], 4
      %s21 = int_to_ptr.vmem [resolvable:$true] %s20
      %26 = dma.hbm_to_vmem [thread:$0]  %s1, 12288, %s21, [#allocation3], 128, 128, 8
    $region9: #{autoencoder_forward.1} parent=1 // pred_fallthru
      _
    // Predicated region
    $region10: #{autoencoder_forward.1} parent=1 // pred_check
      _
    $region11: #{autoencoder_forward.1} parent=1 // pred_check_branch
      %28 = sbr.rel (0) target = $region13
    $region12: #{autoencoder_forward.1} parent=1 // pred_region
      _
    $region13: #{autoencoder_forward.1} parent=1 // pred_fallthru
      _
    // Predicated region
    $region14: #{autoencoder_forward.1} parent=1 // pred_check
      _
    $region15: #{autoencoder_forward.1} parent=1 // pred_check_branch
      %30 = sbr.rel (0) target = $region17
    $region16: #{autoencoder_forward.1} parent=1 // pred_region
      %31 = dma.done [#allocation3], 12288
    $region17: #{autoencoder_forward.1} parent=1 // pred_fallthru
      _
    %v32 = vld [vmem:[%s0] sm:$0xff]
    %v33 = vld [vmem:[#allocation2] sm:$0xff]
    %v34 = vld [vmem:[#allocation2 + $0x8] sm:$0xff]
    %v35 = vld [vmem:[#allocation2 + $0x10] sm:$0xff]
    %v36 = vld [vmem:[#allocation2 + $0x18] sm:$0xff]
    %v37 = vld [vmem:[#allocation2 + $0x20] sm:$0xff]
    %v38 = vld [vmem:[#allocation2 + $0x28] sm:$0xff]
    %v39 = vld [vmem:[#allocation2 + $0x30] sm:$0xff]
    %v40 = vld [vmem:[#allocation2 + $0x38] sm:$0xff]
    %v41 = vld [vmem:[#allocation2 + $0x40] sm:$0xff]
    %v42 = vld [vmem:[#allocation2 + $0x48] sm:$0xff]
    %v43 = vld [vmem:[#allocation2 + $0x50] sm:$0xff]
    %v44 = vld [vmem:[#allocation2 + $0x58] sm:$0xff]
    %v45 = vld [vmem:[#allocation2 + $0x60] sm:$0xff]
    %v46 = vld [vmem:[#allocation2 + $0x68] sm:$0xff]
    %v47 = vld [vmem:[#allocation2 + $0x70] sm:$0xff]
    %v48 = vld [vmem:[#allocation2 + $0x78] sm:$0xff]
    %v49 = vld [vmem:[%s2] sm:$0x1]
    %v51 = vlaneseq
    %v52 = vshrl.u32 %v51, 7
    %v53 = vsub.s32 0, %v52
    %v54 = vrot.slane %v49, %v53
    %56 = vmatprep.subr.mxu0 0.0
    %57 = vmatpush1.msra.mxu0 %v48
    %58 = vmatprep.subr.mxu0 0.0
    %59 = vmatpush1.msra.mxu0 %v47
    %60 = vmatprep.subr.mxu0 0.0
    %61 = vmatpush1.msra.mxu0 %v46
    %62 = vmatprep.subr.mxu0 0.0
    %63 = vmatpush1.msra.mxu0 %v45
    %64 = vmatprep.subr.mxu0 0.0
    %65 = vmatpush1.msra.mxu0 %v44
    %66 = vmatprep.subr.mxu0 0.0
    %67 = vmatpush1.msra.mxu0 %v43
    %68 = vmatprep.subr.mxu0 0.0
    %69 = vmatpush1.msra.mxu0 %v42
    %70 = vmatprep.subr.mxu0 0.0
    %71 = vmatpush1.msra.mxu0 %v41
    %72 = vmatprep.subr.mxu0 0.0
    %73 = vmatpush1.msra.mxu0 %v40
    %74 = vmatprep.subr.mxu0 0.0
    %75 = vmatpush1.msra.mxu0 %v39
    %76 = vmatprep.subr.mxu0 0.0
    %77 = vmatpush1.msra.mxu0 %v38
    %78 = vmatprep.subr.mxu0 0.0
    %79 = vmatpush1.msra.mxu0 %v37
    %80 = vmatprep.subr.mxu0 0.0
    %81 = vmatpush1.msra.mxu0 %v36
    %82 = vmatprep.subr.mxu0 0.0
    %83 = vmatpush1.msra.mxu0 %v35
    %84 = vmatprep.subr.mxu0 0.0
    %85 = vmatpush1.msra.mxu0 %v34
    %86 = vmatprep.subr.mxu0 0.0
    %87 = vmatpush1.msra.mxu0 %v33
    %88 = vmatprep.subr.mxu0 0.0
    %89 = vmatpush2.msra.mxu0 0.0
    %90 = vmatprep.subr.mxu0 0.0
    %91 = vmatpush2.msra.mxu0 0.0
    %92 = vmatprep.subr.mxu0 0.0
    %93 = vmatpush2.msra.mxu0 0.0
    %94 = vmatprep.subr.mxu0 0.0
    %95 = vmatpush2.msra.mxu0 0.0
    %96 = vmatprep.subr.mxu0 0.0
    %97 = vmatpush2.msra.mxu0 0.0
    %98 = vmatprep.subr.mxu0 0.0
    %99 = vmatpush2.msra.mxu0 0.0
    %100 = vmatprep.subr.mxu0 0.0
    %101 = vmatpush2.msra.mxu0 0.0
    %102 = vmatprep.subr.mxu0 0.0
    %103 = vmatpush2.msra.mxu0 0.0
    %104 = vmatprep.subr.mxu0 0.0
    %105 = vmatpush2.msra.mxu0 0.0
    %106 = vmatprep.subr.mxu0 0.0
    %107 = vmatpush2.msra.mxu0 0.0
    %108 = vmatprep.subr.mxu0 0.0
    %109 = vmatpush2.msra.mxu0 0.0
    %110 = vmatprep.subr.mxu0 0.0
    %111 = vmatpush2.msra.mxu0 0.0
    %112 = vmatprep.subr.mxu0 0.0
    %113 = vmatpush2.msra.mxu0 0.0
    %114 = vmatprep.subr.mxu0 0.0
    %115 = vmatpush2.msra.mxu0 0.0
    %116 = vmatprep.subr.mxu0 0.0
    %117 = vmatpush2.msra.mxu0 0.0
    %118 = vmatprep.subr.mxu0 0.0
    %119 = vmatpush2.msra.mxu0 0.0
    %120 = vmatprep.mubr.f32.mxu0 0.0
    %121 = vmatmul.mubr.f32.gmra.mxu0 %v32
    %v122 = vpop.f32.mrf.mxu0
    %v123 = vadd.f32 %v54, %v122
    %v124 = vpop.f32.mrf.mxu0
    %125 = vdwg.mxu0
    %v126 = vmax.f32 %v123, 0.0
    %s127 = scalar_lea.vmem [#allocation2], 128
    %v128 = vld [vmem:[%s127] sm:$0xff]
    %v129 = vld [vmem:[%s127 + $0x8] sm:$0xff]
    %v130 = vld [vmem:[%s127 + $0x10] sm:$0xff]
    %v131 = vld [vmem:[%s127 + $0x18] sm:$0xff]
    %v132 = vld [vmem:[%s127 + $0x20] sm:$0xff]
    %v133 = vld [vmem:[%s127 + $0x28] sm:$0xff]
    %v134 = vld [vmem:[%s127 + $0x30] sm:$0xff]
    %v135 = vld [vmem:[%s127 + $0x38] sm:$0xff]
    %v136 = vld [vmem:[%s127 + $0x40] sm:$0xff]
    %v137 = vld [vmem:[%s127 + $0x48] sm:$0xff]
    %v138 = vld [vmem:[%s127 + $0x50] sm:$0xff]
    %v139 = vld [vmem:[%s127 + $0x58] sm:$0xff]
    %v140 = vld [vmem:[%s127 + $0x60] sm:$0xff]
    %v141 = vld [vmem:[%s127 + $0x68] sm:$0xff]
    %v142 = vld [vmem:[%s127 + $0x70] sm:$0xff]
    %v143 = vld [vmem:[%s127 + $0x78] sm:$0xff]
    %s144 = scalar_lea.vmem %s2, 1
    %v145 = vld [vmem:[%s144] sm:$0x1]
    %v147 = vlaneseq
    %v148 = vshrl.u32 %v147, 7
    %v149 = vsub.s32 0, %v148
    %v150 = vrot.slane %v145, %v149
    %152 = vmatprep.subr.mxu0 0.0
    %153 = vmatpush1.msra.mxu0 %v143
    %154 = vmatprep.subr.mxu0 0.0
    %155 = vmatpush1.msra.mxu0 %v142
    %156 = vmatprep.subr.mxu0 0.0
    %157 = vmatpush1.msra.mxu0 %v141
    %158 = vmatprep.subr.mxu0 0.0
    %159 = vmatpush1.msra.mxu0 %v140
    %160 = vmatprep.subr.mxu0 0.0
    %161 = vmatpush1.msra.mxu0 %v139
    %162 = vmatprep.subr.mxu0 0.0
    %163 = vmatpush1.msra.mxu0 %v138
    %164 = vmatprep.subr.mxu0 0.0
    %165 = vmatpush1.msra.mxu0 %v137
    %166 = vmatprep.subr.mxu0 0.0
    %167 = vmatpush1.msra.mxu0 %v136
    %168 = vmatprep.subr.mxu0 0.0
    %169 = vmatpush1.msra.mxu0 %v135
    %170 = vmatprep.subr.mxu0 0.0
    %171 = vmatpush1.msra.mxu0 %v134
    %172 = vmatprep.subr.mxu0 0.0
    %173 = vmatpush1.msra.mxu0 %v133
    %174 = vmatprep.subr.mxu0 0.0
    %175 = vmatpush1.msra.mxu0 %v132
    %176 = vmatprep.subr.mxu0 0.0
    %177 = vmatpush1.msra.mxu0 %v131
    %178 = vmatprep.subr.mxu0 0.0
    %179 = vmatpush1.msra.mxu0 %v130
    %180 = vmatprep.subr.mxu0 0.0
    %181 = vmatpush1.msra.mxu0 %v129
    %182 = vmatprep.subr.mxu0 0.0
    %183 = vmatpush1.msra.mxu0 %v128
    %184 = vmatprep.subr.mxu0 0.0
    %185 = vmatpush2.msra.mxu0 0.0
    %186 = vmatprep.subr.mxu0 0.0
    %187 = vmatpush2.msra.mxu0 0.0
    %188 = vmatprep.subr.mxu0 0.0
    %189 = vmatpush2.msra.mxu0 0.0
    %190 = vmatprep.subr.mxu0 0.0
    %191 = vmatpush2.msra.mxu0 0.0
    %192 = vmatprep.subr.mxu0 0.0
    %193 = vmatpush2.msra.mxu0 0.0
    %194 = vmatprep.subr.mxu0 0.0
    %195 = vmatpush2.msra.mxu0 0.0
    %196 = vmatprep.subr.mxu0 0.0
    %197 = vmatpush2.msra.mxu0 0.0
    %198 = vmatprep.subr.mxu0 0.0
    %199 = vmatpush2.msra.mxu0 0.0
    %200 = vmatprep.subr.mxu0 0.0
    %201 = vmatpush2.msra.mxu0 0.0
    %202 = vmatprep.subr.mxu0 0.0
    %203 = vmatpush2.msra.mxu0 0.0
    %204 = vmatprep.subr.mxu0 0.0
    %205 = vmatpush2.msra.mxu0 0.0
    %206 = vmatprep.subr.mxu0 0.0
    %207 = vmatpush2.msra.mxu0 0.0
    %208 = vmatprep.subr.mxu0 0.0
    %209 = vmatpush2.msra.mxu0 0.0
    %210 = vmatprep.subr.mxu0 0.0
    %211 = vmatpush2.msra.mxu0 0.0
    %212 = vmatprep.subr.mxu0 0.0
    %213 = vmatpush2.msra.mxu0 0.0
    %214 = vmatprep.subr.mxu0 0.0
    %215 = vmatpush2.msra.mxu0 0.0
    %216 = vmatprep.mubr.f32.mxu0 0.0
    %217 = vmatmul.mubr.f32.gmra.mxu0 %v126
    %v218 = vpop.f32.mrf.mxu0
    %v219 = vadd.f32 %v150, %v218
    %v220 = vpop.f32.mrf.mxu0
    %221 = vdwg.mxu0
    %v222 = vmax.f32 %v219, 0.0
    %s223 = scalar_lea.vmem [#allocation2], 256
    %v224 = vld [vmem:[%s223] sm:$0xff]
    %v225 = vld [vmem:[%s223 + $0x8] sm:$0xff]
    %v226 = vld [vmem:[%s223 + $0x10] sm:$0xff]
    %v227 = vld [vmem:[%s223 + $0x18] sm:$0xff]
    %v228 = vld [vmem:[%s223 + $0x20] sm:$0xff]
    %v229 = vld [vmem:[%s223 + $0x28] sm:$0xff]
    %v230 = vld [vmem:[%s223 + $0x30] sm:$0xff]
    %v231 = vld [vmem:[%s223 + $0x38] sm:$0xff]
    %v232 = vld [vmem:[%s223 + $0x40] sm:$0xff]
    %v233 = vld [vmem:[%s223 + $0x48] sm:$0xff]
    %v234 = vld [vmem:[%s223 + $0x50] sm:$0xff]
    %v235 = vld [vmem:[%s223 + $0x58] sm:$0xff]
    %v236 = vld [vmem:[%s223 + $0x60] sm:$0xff]
    %v237 = vld [vmem:[%s223 + $0x68] sm:$0xff]
    %v238 = vld [vmem:[%s223 + $0x70] sm:$0xff]
    %v239 = vld [vmem:[%s223 + $0x78] sm:$0xff]
    %s240 = scalar_lea.vmem %s2, 2
    %v241 = vld [vmem:[%s240] sm:$0x1]
    %v243 = vlaneseq
    %v244 = vshrl.u32 %v243, 7
    %v245 = vsub.s32 0, %v244
    %v246 = vrot.slane %v241, %v245
    %248 = vmatprep.subr.mxu0 0.0
    %249 = vmatpush1.msra.mxu0 %v239
    %250 = vmatprep.subr.mxu0 0.0
    %251 = vmatpush1.msra.mxu0 %v238
    %252 = vmatprep.subr.mxu0 0.0
    %253 = vmatpush1.msra.mxu0 %v237
    %254 = vmatprep.subr.mxu0 0.0
    %255 = vmatpush1.msra.mxu0 %v236
    %256 = vmatprep.subr.mxu0 0.0
    %257 = vmatpush1.msra.mxu0 %v235
    %258 = vmatprep.subr.mxu0 0.0
    %259 = vmatpush1.msra.mxu0 %v234
    %260 = vmatprep.subr.mxu0 0.0
    %261 = vmatpush1.msra.mxu0 %v233
    %262 = vmatprep.subr.mxu0 0.0
    %263 = vmatpush1.msra.mxu0 %v232
    %264 = vmatprep.subr.mxu0 0.0
    %265 = vmatpush1.msra.mxu0 %v231
    %266 = vmatprep.subr.mxu0 0.0
    %267 = vmatpush1.msra.mxu0 %v230
    %268 = vmatprep.subr.mxu0 0.0
    %269 = vmatpush1.msra.mxu0 %v229
    %270 = vmatprep.subr.mxu0 0.0
    %271 = vmatpush1.msra.mxu0 %v228
    %272 = vmatprep.subr.mxu0 0.0
    %273 = vmatpush1.msra.mxu0 %v227
    %274 = vmatprep.subr.mxu0 0.0
    %275 = vmatpush1.msra.mxu0 %v226
    %276 = vmatprep.subr.mxu0 0.0
    %277 = vmatpush1.msra.mxu0 %v225
    %278 = vmatprep.subr.mxu0 0.0
    %279 = vmatpush1.msra.mxu0 %v224
    %280 = vmatprep.subr.mxu0 0.0
    %281 = vmatpush2.msra.mxu0 0.0
    %282 = vmatprep.subr.mxu0 0.0
    %283 = vmatpush2.msra.mxu0 0.0
    %284 = vmatprep.subr.mxu0 0.0
    %285 = vmatpush2.msra.mxu0 0.0
    %286 = vmatprep.subr.mxu0 0.0
    %287 = vmatpush2.msra.mxu0 0.0
    %288 = vmatprep.subr.mxu0 0.0
    %289 = vmatpush2.msra.mxu0 0.0
    %290 = vmatprep.subr.mxu0 0.0
    %291 = vmatpush2.msra.mxu0 0.0
    %292 = vmatprep.subr.mxu0 0.0
    %293 = vmatpush2.msra.mxu0 0.0
    %294 = vmatprep.subr.mxu0 0.0
    %295 = vmatpush2.msra.mxu0 0.0
    %296 = vmatprep.subr.mxu0 0.0
    %297 = vmatpush2.msra.mxu0 0.0
    %298 = vmatprep.subr.mxu0 0.0
    %299 = vmatpush2.msra.mxu0 0.0
    %300 = vmatprep.subr.mxu0 0.0
    %301 = vmatpush2.msra.mxu0 0.0
    %302 = vmatprep.subr.mxu0 0.0
    %303 = vmatpush2.msra.mxu0 0.0
    %304 = vmatprep.subr.mxu0 0.0
    %305 = vmatpush2.msra.mxu0 0.0
    %306 = vmatprep.subr.mxu0 0.0
    %307 = vmatpush2.msra.mxu0 0.0
    %308 = vmatprep.subr.mxu0 0.0
    %309 = vmatpush2.msra.mxu0 0.0
    %310 = vmatprep.subr.mxu0 0.0
    %311 = vmatpush2.msra.mxu0 0.0
    %312 = vmatprep.mubr.f32.mxu0 0.0
    %313 = vmatmul.mubr.f32.gmra.mxu0 %v222
    %v314 = vpop.f32.mrf.mxu0
    %v315 = vadd.f32 %v246, %v314
    %v316 = vpop.f32.mrf.mxu0
    %317 = vdwg.mxu0
    %318 = vst [vmem:[#allocation5] sm:$0xff] %v315
    %s319 = scalar_lea.vmem [#allocation2], 384
    %v320 = vld [vmem:[%s319] sm:$0xff]
    %v321 = vld [vmem:[%s319 + $0x8] sm:$0xff]
    %v322 = vld [vmem:[%s319 + $0x10] sm:$0xff]
    %v323 = vld [vmem:[%s319 + $0x18] sm:$0xff]
    %v324 = vld [vmem:[%s319 + $0x20] sm:$0xff]
    %v325 = vld [vmem:[%s319 + $0x28] sm:$0xff]
    %v326 = vld [vmem:[%s319 + $0x30] sm:$0xff]
    %v327 = vld [vmem:[%s319 + $0x38] sm:$0xff]
    %v328 = vld [vmem:[%s319 + $0x40] sm:$0xff]
    %v329 = vld [vmem:[%s319 + $0x48] sm:$0xff]
    %v330 = vld [vmem:[%s319 + $0x50] sm:$0xff]
    %v331 = vld [vmem:[%s319 + $0x58] sm:$0xff]
    %v332 = vld [vmem:[%s319 + $0x60] sm:$0xff]
    %v333 = vld [vmem:[%s319 + $0x68] sm:$0xff]
    %v334 = vld [vmem:[%s319 + $0x70] sm:$0xff]
    %v335 = vld [vmem:[%s319 + $0x78] sm:$0xff]
    %s336 = scalar_lea.vmem %s2, 3
    %v337 = vld [vmem:[%s336] sm:$0x1]
    %v339 = vlaneseq
    %v340 = vshrl.u32 %v339, 7
    %v341 = vsub.s32 0, %v340
    %v342 = vrot.slane %v337, %v341
    %344 = vmatprep.subr.mxu0 0.0
    %345 = vmatpush1.msra.mxu0 %v335
    %346 = vmatprep.subr.mxu0 0.0
    %347 = vmatpush1.msra.mxu0 %v334
    %348 = vmatprep.subr.mxu0 0.0
    %349 = vmatpush1.msra.mxu0 %v333
    %350 = vmatprep.subr.mxu0 0.0
    %351 = vmatpush1.msra.mxu0 %v332
    %352 = vmatprep.subr.mxu0 0.0
    %353 = vmatpush1.msra.mxu0 %v331
    %354 = vmatprep.subr.mxu0 0.0
    %355 = vmatpush1.msra.mxu0 %v330
    %356 = vmatprep.subr.mxu0 0.0
    %357 = vmatpush1.msra.mxu0 %v329
    %358 = vmatprep.subr.mxu0 0.0
    %359 = vmatpush1.msra.mxu0 %v328
    %360 = vmatprep.subr.mxu0 0.0
    %361 = vmatpush1.msra.mxu0 %v327
    %362 = vmatprep.subr.mxu0 0.0
    %363 = vmatpush1.msra.mxu0 %v326
    %364 = vmatprep.subr.mxu0 0.0
    %365 = vmatpush1.msra.mxu0 %v325
    %366 = vmatprep.subr.mxu0 0.0
    %367 = vmatpush1.msra.mxu0 %v324
    %368 = vmatprep.subr.mxu0 0.0
    %369 = vmatpush1.msra.mxu0 %v323
    %370 = vmatprep.subr.mxu0 0.0
    %371 = vmatpush1.msra.mxu0 %v322
    %372 = vmatprep.subr.mxu0 0.0
    %373 = vmatpush1.msra.mxu0 %v321
    %374 = vmatprep.subr.mxu0 0.0
    %375 = vmatpush1.msra.mxu0 %v320
    %376 = vmatprep.subr.mxu0 0.0
    %377 = vmatpush2.msra.mxu0 0.0
    %378 = vmatprep.subr.mxu0 0.0
    %379 = vmatpush2.msra.mxu0 0.0
    %380 = vmatprep.subr.mxu0 0.0
    %381 = vmatpush2.msra.mxu0 0.0
    %382 = vmatprep.subr.mxu0 0.0
    %383 = vmatpush2.msra.mxu0 0.0
    %384 = vmatprep.subr.mxu0 0.0
    %385 = vmatpush2.msra.mxu0 0.0
    %386 = vmatprep.subr.mxu0 0.0
    %387 = vmatpush2.msra.mxu0 0.0
    %388 = vmatprep.subr.mxu0 0.0
    %389 = vmatpush2.msra.mxu0 0.0
    %390 = vmatprep.subr.mxu0 0.0
    %391 = vmatpush2.msra.mxu0 0.0
    %392 = vmatprep.subr.mxu0 0.0
    %393 = vmatpush2.msra.mxu0 0.0
    %394 = vmatprep.subr.mxu0 0.0
    %395 = vmatpush2.msra.mxu0 0.0
    %396 = vmatprep.subr.mxu0 0.0
    %397 = vmatpush2.msra.mxu0 0.0
    %398 = vmatprep.subr.mxu0 0.0
    %399 = vmatpush2.msra.mxu0 0.0
    %400 = vmatprep.subr.mxu0 0.0
    %401 = vmatpush2.msra.mxu0 0.0
    %402 = vmatprep.subr.mxu0 0.0
    %403 = vmatpush2.msra.mxu0 0.0
    %404 = vmatprep.subr.mxu0 0.0
    %405 = vmatpush2.msra.mxu0 0.0
    %406 = vmatprep.subr.mxu0 0.0
    %407 = vmatpush2.msra.mxu0 0.0
    %408 = vmatprep.mubr.f32.mxu0 0.0
    %409 = vmatmul.mubr.f32.gmra.mxu0 %v315
    %v410 = vpop.f32.mrf.mxu0
    %v411 = vadd.f32 %v342, %v410
    %v412 = vpop.f32.mrf.mxu0
    %413 = vdwg.mxu0
    %v414 = vmax.f32 %v411, 0.0
    %s415 = scalar_lea.vmem [#allocation2], 512
    %v416 = vld [vmem:[%s415] sm:$0xff]
    %v417 = vld [vmem:[%s415 + $0x8] sm:$0xff]
    %v418 = vld [vmem:[%s415 + $0x10] sm:$0xff]
    %v419 = vld [vmem:[%s415 + $0x18] sm:$0xff]
    %v420 = vld [vmem:[%s415 + $0x20] sm:$0xff]
    %v421 = vld [vmem:[%s415 + $0x28] sm:$0xff]
    %v422 = vld [vmem:[%s415 + $0x30] sm:$0xff]
    %v423 = vld [vmem:[%s415 + $0x38] sm:$0xff]
    %v424 = vld [vmem:[%s415 + $0x40] sm:$0xff]
    %v425 = vld [vmem:[%s415 + $0x48] sm:$0xff]
    %v426 = vld [vmem:[%s415 + $0x50] sm:$0xff]
    %v427 = vld [vmem:[%s415 + $0x58] sm:$0xff]
    %v428 = vld [vmem:[%s415 + $0x60] sm:$0xff]
    %v429 = vld [vmem:[%s415 + $0x68] sm:$0xff]
    %v430 = vld [vmem:[%s415 + $0x70] sm:$0xff]
    %v431 = vld [vmem:[%s415 + $0x78] sm:$0xff]
    %s432 = scalar_lea.vmem %s2, 4
    %v433 = vld [vmem:[%s432] sm:$0x1]
    %v435 = vlaneseq
    %v436 = vshrl.u32 %v435, 7
    %v437 = vsub.s32 0, %v436
    %v438 = vrot.slane %v433, %v437
    %440 = vmatprep.subr.mxu0 0.0
    %441 = vmatpush1.msra.mxu0 %v431
    %442 = vmatprep.subr.mxu0 0.0
    %443 = vmatpush1.msra.mxu0 %v430
    %444 = vmatprep.subr.mxu0 0.0
    %445 = vmatpush1.msra.mxu0 %v429
    %446 = vmatprep.subr.mxu0 0.0
    %447 = vmatpush1.msra.mxu0 %v428
    %448 = vmatprep.subr.mxu0 0.0
    %449 = vmatpush1.msra.mxu0 %v427
    %450 = vmatprep.subr.mxu0 0.0
    %451 = vmatpush1.msra.mxu0 %v426
    %452 = vmatprep.subr.mxu0 0.0
    %453 = vmatpush1.msra.mxu0 %v425
    %454 = vmatprep.subr.mxu0 0.0
    %455 = vmatpush1.msra.mxu0 %v424
    %456 = vmatprep.subr.mxu0 0.0
    %457 = vmatpush1.msra.mxu0 %v423
    %458 = vmatprep.subr.mxu0 0.0
    %459 = vmatpush1.msra.mxu0 %v422
    %460 = vmatprep.subr.mxu0 0.0
    %461 = vmatpush1.msra.mxu0 %v421
    %462 = vmatprep.subr.mxu0 0.0
    %463 = vmatpush1.msra.mxu0 %v420
    %464 = vmatprep.subr.mxu0 0.0
    %465 = vmatpush1.msra.mxu0 %v419
    %466 = vmatprep.subr.mxu0 0.0
    %467 = vmatpush1.msra.mxu0 %v418
    %468 = vmatprep.subr.mxu0 0.0
    %469 = vmatpush1.msra.mxu0 %v417
    %470 = vmatprep.subr.mxu0 0.0
    %471 = vmatpush1.msra.mxu0 %v416
    %472 = vmatprep.subr.mxu0 0.0
    %473 = vmatpush2.msra.mxu0 0.0
    %474 = vmatprep.subr.mxu0 0.0
    %475 = vmatpush2.msra.mxu0 0.0
    %476 = vmatprep.subr.mxu0 0.0
    %477 = vmatpush2.msra.mxu0 0.0
    %478 = vmatprep.subr.mxu0 0.0
    %479 = vmatpush2.msra.mxu0 0.0
    %480 = vmatprep.subr.mxu0 0.0
    %481 = vmatpush2.msra.mxu0 0.0
    %482 = vmatprep.subr.mxu0 0.0
    %483 = vmatpush2.msra.mxu0 0.0
    %484 = vmatprep.subr.mxu0 0.0
    %485 = vmatpush2.msra.mxu0 0.0
    %486 = vmatprep.subr.mxu0 0.0
    %487 = vmatpush2.msra.mxu0 0.0
    %488 = vmatprep.subr.mxu0 0.0
    %489 = vmatpush2.msra.mxu0 0.0
    %490 = vmatprep.subr.mxu0 0.0
    %491 = vmatpush2.msra.mxu0 0.0
    %492 = vmatprep.subr.mxu0 0.0
    %493 = vmatpush2.msra.mxu0 0.0
    %494 = vmatprep.subr.mxu0 0.0
    %495 = vmatpush2.msra.mxu0 0.0
    %496 = vmatprep.subr.mxu0 0.0
    %497 = vmatpush2.msra.mxu0 0.0
    %498 = vmatprep.subr.mxu0 0.0
    %499 = vmatpush2.msra.mxu0 0.0
    %500 = vmatprep.subr.mxu0 0.0
    %501 = vmatpush2.msra.mxu0 0.0
    %502 = vmatprep.subr.mxu0 0.0
    %503 = vmatpush2.msra.mxu0 0.0
    %504 = vmatprep.mubr.f32.mxu0 0.0
    %505 = vmatmul.mubr.f32.gmra.mxu0 %v414
    %v506 = vpop.f32.mrf.mxu0
    %v507 = vadd.f32 %v438, %v506
    %v508 = vpop.f32.mrf.mxu0
    %509 = vdwg.mxu0
    %v510 = vmax.f32 %v507, 0.0
    %s511 = scalar_lea.vmem [#allocation2], 640
    %v512 = vld [vmem:[%s511] sm:$0xff]
    %v513 = vld [vmem:[%s511 + $0x8] sm:$0xff]
    %v514 = vld [vmem:[%s511 + $0x10] sm:$0xff]
    %v515 = vld [vmem:[%s511 + $0x18] sm:$0xff]
    %v516 = vld [vmem:[%s511 + $0x20] sm:$0xff]
    %v517 = vld [vmem:[%s511 + $0x28] sm:$0xff]
    %v518 = vld [vmem:[%s511 + $0x30] sm:$0xff]
    %v519 = vld [vmem:[%s511 + $0x38] sm:$0xff]
    %v520 = vld [vmem:[%s511 + $0x40] sm:$0xff]
    %v521 = vld [vmem:[%s511 + $0x48] sm:$0xff]
    %v522 = vld [vmem:[%s511 + $0x50] sm:$0xff]
    %v523 = vld [vmem:[%s511 + $0x58] sm:$0xff]
    %v524 = vld [vmem:[%s511 + $0x60] sm:$0xff]
    %v525 = vld [vmem:[%s511 + $0x68] sm:$0xff]
    %v526 = vld [vmem:[%s511 + $0x70] sm:$0xff]
    %v527 = vld [vmem:[%s511 + $0x78] sm:$0xff]
    %s528 = scalar_lea.vmem %s2, 5
    %v529 = vld [vmem:[%s528] sm:$0x1]
    %v531 = vlaneseq
    %v532 = vshrl.u32 %v531, 7
    %v533 = vsub.s32 0, %v532
    %v534 = vrot.slane %v529, %v533
    %536 = vmatprep.subr.mxu0 0.0
    %537 = vmatpush1.msra.mxu0 %v527
    %538 = vmatprep.subr.mxu0 0.0
    %539 = vmatpush1.msra.mxu0 %v526
    %540 = vmatprep.subr.mxu0 0.0
    %541 = vmatpush1.msra.mxu0 %v525
    %542 = vmatprep.subr.mxu0 0.0
    %543 = vmatpush1.msra.mxu0 %v524
    %544 = vmatprep.subr.mxu0 0.0
    %545 = vmatpush1.msra.mxu0 %v523
    %546 = vmatprep.subr.mxu0 0.0
    %547 = vmatpush1.msra.mxu0 %v522
    %548 = vmatprep.subr.mxu0 0.0
    %549 = vmatpush1.msra.mxu0 %v521
    %550 = vmatprep.subr.mxu0 0.0
    %551 = vmatpush1.msra.mxu0 %v520
    %552 = vmatprep.subr.mxu0 0.0
    %553 = vmatpush1.msra.mxu0 %v519
    %554 = vmatprep.subr.mxu0 0.0
    %555 = vmatpush1.msra.mxu0 %v518
    %556 = vmatprep.subr.mxu0 0.0
    %557 = vmatpush1.msra.mxu0 %v517
    %558 = vmatprep.subr.mxu0 0.0
    %559 = vmatpush1.msra.mxu0 %v516
    %560 = vmatprep.subr.mxu0 0.0
    %561 = vmatpush1.msra.mxu0 %v515
    %562 = vmatprep.subr.mxu0 0.0
    %563 = vmatpush1.msra.mxu0 %v514
    %564 = vmatprep.subr.mxu0 0.0
    %565 = vmatpush1.msra.mxu0 %v513
    %566 = vmatprep.subr.mxu0 0.0
    %567 = vmatpush1.msra.mxu0 %v512
    %568 = vmatprep.subr.mxu0 0.0
    %569 = vmatpush2.msra.mxu0 0.0
    %570 = vmatprep.subr.mxu0 0.0
    %571 = vmatpush2.msra.mxu0 0.0
    %572 = vmatprep.subr.mxu0 0.0
    %573 = vmatpush2.msra.mxu0 0.0
    %574 = vmatprep.subr.mxu0 0.0
    %575 = vmatpush2.msra.mxu0 0.0
    %576 = vmatprep.subr.mxu0 0.0
    %577 = vmatpush2.msra.mxu0 0.0
    %578 = vmatprep.subr.mxu0 0.0
    %579 = vmatpush2.msra.mxu0 0.0
    %580 = vmatprep.subr.mxu0 0.0
    %581 = vmatpush2.msra.mxu0 0.0
    %582 = vmatprep.subr.mxu0 0.0
    %583 = vmatpush2.msra.mxu0 0.0
    %584 = vmatprep.subr.mxu0 0.0
    %585 = vmatpush2.msra.mxu0 0.0
    %586 = vmatprep.subr.mxu0 0.0
    %587 = vmatpush2.msra.mxu0 0.0
    %588 = vmatprep.subr.mxu0 0.0
    %589 = vmatpush2.msra.mxu0 0.0
    %590 = vmatprep.subr.mxu0 0.0
    %591 = vmatpush2.msra.mxu0 0.0
    %592 = vmatprep.subr.mxu0 0.0
    %593 = vmatpush2.msra.mxu0 0.0
    %594 = vmatprep.subr.mxu0 0.0
    %595 = vmatpush2.msra.mxu0 0.0
    %596 = vmatprep.subr.mxu0 0.0
    %597 = vmatpush2.msra.mxu0 0.0
    %598 = vmatprep.subr.mxu0 0.0
    %599 = vmatpush2.msra.mxu0 0.0
    %600 = vmatprep.mubr.f32.mxu0 0.0
    %601 = vmatmul.mubr.f32.gmra.mxu0 %v510
    %v602 = vpop.f32.mrf.mxu0
    %v603 = vadd.f32 %v534, %v602
    %v604 = vpop.f32.mrf.mxu0
    %605 = vdwg.mxu0
    %606 = vst [vmem:[#allocation6] sm:$0xff] %v603
    // Predicated region
    $region18: #{autoencoder_forward.1} parent=1 // pred_check
      _
    $region19: #{autoencoder_forward.1} parent=1 // pred_check_branch
      %608 = sbr.rel (0) target = $region21
    $region20: #{autoencoder_forward.1} parent=1 // pred_region
      %s610 = ssub.s32 128, 128
      %611 = vsyncadd [#allocation4], %s610
      %s613 = sshll.u32 [#allocation5], 4
      %s614 = int_to_ptr.vmem [resolvable:$true] %s613
      %616 = dma.vmem_to_hbm [thread:$0]  %s614, 128, %s3, [#allocation4]
    $region21: #{autoencoder_forward.1} parent=1 // pred_fallthru
      _
    // Predicated region
    $region22: #{autoencoder_forward.1} parent=1 // pred_check
      _
    $region23: #{autoencoder_forward.1} parent=1 // pred_check_branch
      %618 = sbr.rel (0) target = $region25
    $region24: #{autoencoder_forward.1} parent=1 // pred_region
      %s620 = ssub.s32 128, 128
      %621 = vsyncadd [#allocation7], %s620
      %s623 = sshll.u32 [#allocation6], 4
      %s624 = int_to_ptr.vmem [resolvable:$true] %s623
      %626 = dma.vmem_to_hbm [thread:$0]  %s624, 128, %s4, [#allocation7]
    $region25: #{autoencoder_forward.1} parent=1 // pred_fallthru
      _
    // Predicated region
    $region26: #{autoencoder_forward.1} parent=1 // pred_check
      _
    $region27: #{autoencoder_forward.1} parent=1 // pred_check_branch
      %628 = sbr.rel (0) target = $region29
    $region28: #{autoencoder_forward.1} parent=1 // pred_region
      %629 = dma.done [#allocation4], 128
    $region29: #{autoencoder_forward.1} parent=1 // pred_fallthru
      _
    // Predicated region
    $region30: #{autoencoder_forward.1} parent=1 // pred_check
      _
    $region31: #{autoencoder_forward.1} parent=1 // pred_check_branch
      %631 = sbr.rel (0) target = $region33
    $region32: #{autoencoder_forward.1} parent=1 // pred_region
      %632 = dma.done [#allocation7], 128
    $region33: #{autoencoder_forward.1} parent=1 // pred_fallthru
      _
    %633 = vsyncpa [#allocation3], 1
    %634 = vsyncpa [#allocation4], 1
    %635 = vsyncpa [#allocation7], 1

</llo_original>
